<compile_context>
chip_gen: v7x
topology: tpu7x:2x2x1
jax: 0.10.0
libtpu: 0.0.40
codegen_flags: <defaults>
</compile_context>

<pallas_src>
import jax
import jax.numpy as jnp
from jax import lax
from jax.experimental import pallas as pl
from jax.experimental.pallas import tpu as pltpu


def _round_up(x, m):
    return ((x + m - 1) // m) * m


# ---------------------------------------------------------------------------
# Host-side fusion of Linear(N -> 2N) and Conv1d(1 -> 2, k=4, s=1, p=1).
# ---------------------------------------------------------------------------
def _fuse_fc_conv1(wfc, bfc, w1, b1, n_pad):
    """Returns (W_big (N, 4*n_pad), b_big (4*n_pad,)) such that

        sigmoid(x @ W_big + b_big)[:, blk*n_pad : blk*n_pad + N]

    gives the conv1 post-sigmoid activations de-interleaved as
    [B0 | A0 | B1 | A1] (see module docstring).  Columns N..n_pad-1 of each
    block are zero padding (lane-density only).  One-time precompute, so it is
    done in f32 HIGHEST precision.
    """
    N, L = wfc.shape                      # L = 2N
    L1 = L - 1
    f32 = jnp.float32
    hi = lax.Precision.HIGHEST
    s = jnp.arange(L)[:, None]
    t = jnp.arange(L1)[None, :]
    d = s - t + 1                         # conv1 tap index (valid taps 0..3)
    pad = n_pad - N

    blocks_w, blocks_b = [], []
    for o in range(2):
        # Banded conv1 matrix: M[s, t] = w1[o, 0, s - t + 1] where in range.
        M = jnp.zeros((L, L1), f32)
        for k in range(4):
            M = M + (d == k).astype(f32) * w1[o, 0, k]
        G = jnp.dot(wfc.astype(f32), M, precision=hi)              # (N, L1)
        g = jnp.dot(bfc.astype(f32), M, precision=hi) + b1[o]      # (L1,)

        We = G[:, 0::2]                                            # even taps
        be = g[0::2]
        # Odd-shift block: t = 0 column is conv2's left zero pad -> zero
        # weight column + large-negative bias so sigmoid ~ 0 (no kernel mask).
        Wo = jnp.concatenate([jnp.zeros((N, 1), f32), G[:, 1::2]], axis=1)
        bo = jnp.concatenate([jnp.full((1,), -30.0, f32), g[1::2]], axis=0)
        if pad:
            We = jnp.pad(We, ((0, 0), (0, pad)))
            Wo = jnp.pad(Wo, ((0, 0), (0, pad)))
            be = jnp.pad(be, (0, pad))
            bo = jnp.pad(bo, (0, pad))
        blocks_w += [We, Wo]
        blocks_b += [be, bo]

    return jnp.concatenate(blocks_w, axis=1), jnp.concatenate(blocks_b, axis=0)


def eve_prepare(p):
    """One-time host-side fusion/cast of the weights (O(N * 4N) HIGHEST-prec
    precompute).  Call once per weight set and reuse across forward calls."""
    N = p['wfc'].shape[0]
    n_pad = N if N % 128 == 0 else _round_up(N, 128)   # lane-dense output width
    w_big, b_big = _fuse_fc_conv1(p['wfc'], p['bfc'], p['w1'], p['b1'], n_pad)
    fused = dict(p)
    fused['_n'] = N
    fused['_np'] = n_pad
    fused['_w_big'] = w_big.astype(jnp.bfloat16)            # MXU operand
    fused['_b_big'] = b_big.astype(jnp.float32)[None, :]    # f32: keeps sentinel
    fused['_w2'] = p['w2'].reshape(-1).astype(jnp.float32)
    fused['_b2'] = p['b2'].astype(jnp.float32)
    fused['_w3'] = p['w3'].reshape(-1).astype(jnp.float32)
    fused['_b3'] = p['b3'].astype(jnp.float32)
    fused['_w4'] = p['w4'].reshape(-1).astype(jnp.float32)
    fused['_b4'] = p['b4'].astype(jnp.float32)
    return fused


# ---------------------------------------------------------------------------
# Kernel
# ---------------------------------------------------------------------------
def _make_eve_kernel(n_pad, ch, ep_dtype):
    n_chunks = n_pad // ch

    def kernel(x_ref, wbig_ref, bbig_ref,
               w2_ref, b2_ref, w3_ref, b3_ref, w4_ref, b4_ref,
               out_ref, acc_ref):
        f32 = jnp.float32
        k = pl.program_id(1)

        # Fused FC+conv1 partial product.  x arrives f32 and is cast to bf16
        # on the VPU (free filler under the MXU/DMA-bound loop); bf16 MXU
        # operands, f32 accumulation.
        part = jnp.dot(x_ref[...].astype(jnp.bfloat16), wbig_ref[...],
                       preferred_element_type=f32)

        @pl.when(k == 0)
        def _():
            # Bias folded into the accumulator init (saves a (TB,4Np) add later).
            acc_ref[...] = bbig_ref[...] + part

        @pl.when(k != 0)
        def _():
            acc_ref[...] += part

        @pl.when(k == pl.num_programs(1) - 1)
        def _():
            # Scalar conv weights (SMEM) -> (1,1) constants in the epilogue
            # dtype (cast done in vector land; bf16 on v6e/v7x, f32 on v5e).
            def consts(ref, n):
                return [ref[i].reshape(1, 1).astype(ep_dtype) for i in range(n)]
            w2 = consts(w2_ref, 16)
            b2 = consts(b2_ref, 4)
            w3 = consts(w3_ref, 16)
            b3 = consts(b3_ref, 4)
            w4 = consts(w4_ref, 4)
            b4 = b4_ref[0].reshape(1, 1).astype(ep_dtype)

            # Epilogue chunked along the lane axis: the sigmoids of chunk j
            # overlap the conv FMAs of chunk j-1 and live temporaries stay
            # small (important for TB=256 on v7x's 64 MiB VMEM).
            def chunk(j, carry):
                base = j * ch

                def blk(c):
                    start = c * n_pad + base
                    if not isinstance(start, int):
                        start = pl.multiple_of(start, ch)
                    return jax.nn.sigmoid(acc_ref[:, pl.ds(start, ch)]
                                          ).astype(ep_dtype)

                h_b0, h_a0, h_b1, h_a1 = blk(0), blk(1), blk(2), blk(3)

                # conv2: Conv1d(2->4, k=2, s=2, p=1) == per-lane even/odd mix.
                h2 = []
                for o in range(4):
                    a2 = (w2[4 * o + 0] * h_a0 + w2[4 * o + 1] * h_b0
                          + w2[4 * o + 2] * h_a1 + w2[4 * o + 3] * h_b1
                          + b2[o])
                    h2.append(jax.nn.sigmoid(a2))

                # conv3: 1x1 conv (4->4) + sigmoid.
                h3 = []
                for o in range(4):
                    a3 = w3[4 * o] * h2[0]
                    for c in range(1, 4):
                        a3 = a3 + w3[4 * o + c] * h2[c]
                    h3.append(jax.nn.sigmoid(a3 + b3[o]))

                # conv4: 1x1 conv (4->1) + tanh.
                a4 = w4[0] * h3[0]
                for c in range(1, 4):
                    a4 = a4 + w4[c] * h3[c]
                y = jnp.tanh(a4 + b4)

                start_o = base if isinstance(base, int) else pl.multiple_of(base, ch)
                out_ref[:, pl.ds(start_o, ch)] = y.astype(out_ref.dtype)
                return carry

            if n_chunks == 1:
                chunk(0, 0)                       # fully static path
            else:
                lax.fori_loop(0, n_chunks, chunk, 0, unroll=(n_chunks <= 8))

    return kernel


# ---------------------------------------------------------------------------
# Tile / VMEM selection
# ---------------------------------------------------------------------------
def _vmem_limits():
    """(vmem_limit_bytes, working-set budget for tile selection)."""
    try:
        cap = int(pltpu.get_tpu_info().vmem_capacity_bytes)
    except Exception:
        cap = 64 * 1024 * 1024            # safe on every generation (v7x physical)
    limit = min(cap, 100 * 1024 * 1024)   # raise the conservative default on v5e/v6e
    return limit, int(limit * 0.7)        # headroom for epilogue temps / scratch


def _select_tiles(B, N, n_pad, budget_bytes):
    """Pick (TB, TK).  TK == N keeps the fused (N, 4*n_pad) weight resident in
    VMEM: its block index never changes, so it is DMA'd exactly once."""
    four_np = 4 * n_pad

    def fits(tb, tk):
        w = 2 * tk * four_np * 2          # bf16 W (conservatively double-buffered)
        xb = 2 * tb * tk * 4              # f32 x tile, double-buffered
        acc = tb * four_np * 4            # f32 accumulator scratch
        out = 2 * tb * n_pad * 4          # f32 out tile, double-buffered
        bias = four_np * 4
        return w + xb + acc + out + bias <= budget_bytes

    # Preferred: weight resident.  Split the batch into >=2 tiles when it is
    # big enough so the "parallel" batch axis can span both v7x TensorCores
    # (with W resident, the smaller tile costs nothing on single-TC chips).
    if B < 16:
        resident_tbs = [B]
    else:
        half = min(256, max(8, ((B + 1) // 2) // 8 * 8))
        resident_tbs = [half] + [c for c in (256, 128, 64, 32, 16, 8) if c < half]
    for tb in resident_tbs:
        if fits(tb, N):
            return tb, N

    # Fallback: K-tiled streaming of W; keep TB as large as possible so the
    # arithmetic intensity (~TB flops per W byte) stays high.
    streamed_tbs = [c for c in (512, 256, 128, 64, 32, 16, 8) if c <= B] or [B]
    for tb in streamed_tbs:
        for tk in (2048, 1024, 512, 256, 128):
            if tk < N and N % tk == 0 and fits(tb, tk):
                return tb, tk

    # Last resort (tiny batch / awkward N): full-K with a small batch tile.
    return (B if B < 8 else 8), N


def _default_epilogue_dtype():
    """bf16 elementwise epilogue only on chips with bf16 VPU/EUP (v6e/v7x)."""
    try:
        kind = jax.devices()[0].device_kind.lower()
    except Exception:
        return jnp.float32
    if any(tag in kind for tag in ('v6', 'v7', '7x')):
        return jnp.bfloat16
    return jnp.float32


# ---------------------------------------------------------------------------
# Forward
# ---------------------------------------------------------------------------
def eve_forward(x, p, *, tb=None, tk=None, epilogue_dtype=None):
    """x: (B, N) float32 ciphertext -> (B, N) float32 plaintext estimate."""
    if '_w_big' not in p:
        p = eve_prepare(p)               # convenience path; prefer pre-fusing

    B, N = x.shape
    assert p['_n'] == N, "prepared weights do not match the input width"
    n_pad = p['_np']

    vmem_limit, budget = _vmem_limits()
    tb_auto, tk_auto = _select_tiles(B, N, n_pad, budget)
    TB = tb if tb is not None else tb_auto
    TK = tk if tk is not None else tk_auto
    ep_dtype = (epilogue_dtype if epilogue_dtype is not None
                else _default_epilogue_dtype())

    # Epilogue lane-chunk size (n_pad is always a multiple of 128).
    ch = next(c for c in (512, 256, 128, n_pad) if n_pad % c == 0)

    grid = (pl.cdiv(B, TB), pl.cdiv(N, TK))
    smem = pl.BlockSpec(memory_space=pltpu.MemorySpace.SMEM)
    kernel = _make_eve_kernel(n_pad, ch, ep_dtype)

    out = pl.pallas_call(
        kernel,
        out_shape=jax.ShapeDtypeStruct((B, n_pad), jnp.float32),
        grid=grid,
        in_specs=[
            pl.BlockSpec((TB, TK), lambda i, k: (i, k)),         # x (f32)
            pl.BlockSpec((TK, 4 * n_pad), lambda i, k: (k, 0)),  # fused W (bf16)
            pl.BlockSpec((1, 4 * n_pad), lambda i, k: (0, 0)),   # fused bias (f32)
            smem, smem,                                          # w2 (16,), b2 (4,)
            smem, smem,                                          # w3 (16,), b3 (4,)
            smem, smem,                                          # w4 (4,),  b4 (1,)
        ],
        out_specs=pl.BlockSpec((TB, n_pad), lambda i, k: (i, 0)),
        scratch_shapes=[pltpu.VMEM((TB, 4 * n_pad), jnp.float32)],
        compiler_params=pltpu.CompilerParams(
            dimension_semantics=("parallel", "arbitrary"),
            vmem_limit_bytes=vmem_limit),
    )(x.astype(jnp.float32), p['_w_big'], p['_b_big'],
      p['_w2'], p['_b2'], p['_w3'], p['_b3'], p['_w4'], p['_b4'])

    return out if n_pad == N else out[:, :N]


# ---------------------------------------------------------------------------
# Pure-JAX reference matching the PyTorch forward semantics.
# ---------------------------------------------------------------------------
def eve_ref(x, p):
    B, N = x.shape
    dn = ('NCH', 'OIH', 'NCH')
    y = x @ p['wfc'] + p['bfc']
    h = y[:, None, :]
    h = lax.conv_general_dilated(h, p['w1'], (1,), [(1, 1)], dimension_numbers=dn)
    h = jax.nn.sigmoid(h + p['b1'][None, :, None])
    h = lax.conv_general_dilated(h, p['w2'], (2,), [(1, 1)], dimension_numbers=dn)
    h = jax.nn.sigmoid(h + p['b2'][None, :, None])
    h = lax.conv_general_dilated(h, p['w3'], (1,), [(0, 0)], dimension_numbers=dn)
    h = jax.nn.sigmoid(h + p['b3'][None, :, None])
    h = lax.conv_general_dilated(h, p['w4'], (1,), [(0, 0)], dimension_numbers=dn)
    h = jnp.tanh(h + p['b4'][None, :, None])
    return h.reshape(B, N)


if __name__ == "__main__":
    B, N = 2, 16   # batch=2, cipher=plain=16 (length math requires plain == cipher)
    key = jax.random.PRNGKey(0)
    ks = jax.random.split(key, 11)
    p = {
        # Linear stored as (in, out) = (N, 2N); equivalent to torch W.T.
        'wfc': jax.random.normal(ks[0], (N, 2 * N), jnp.float32) * 0.2,
        'bfc': jax.random.normal(ks[1], (2 * N,), jnp.float32) * 0.1,
        'w1': jax.random.normal(ks[2], (2, 1, 4), jnp.float32) * 0.4,
        'b1': jax.random.normal(ks[3], (2,), jnp.float32) * 0.1,
        'w2': jax.random.normal(ks[4], (4, 2, 2), jnp.float32) * 0.4,
        'b2': jax.random.normal(ks[5], (4,), jnp.float32) * 0.1,
        'w3': jax.random.normal(ks[6], (4, 4, 1), jnp.float32) * 0.4,
        'b3': jax.random.normal(ks[7], (4,), jnp.float32) * 0.1,
        'w4': jax.random.normal(ks[8], (1, 4, 1), jnp.float32) * 0.4,
        'b4': jax.random.normal(ks[9], (1,), jnp.float32) * 0.1,
    }
    x = jax.random.normal(ks[10], (B, N), jnp.float32)

    fused = eve_prepare(p)                      # one-time host-side fc+conv1 fusion
    out = jax.block_until_ready(eve_forward(x, fused))
    ref = jax.block_until_ready(eve_ref(x, p))

    assert out.shape == (B, N), out.shape
    # bf16 MXU operands (+ bf16 epilogue on v6e/v7x) -> loosened tolerance.
    assert jnp.allclose(out, ref, atol=2e-2, rtol=2e-2), (out, ref)
    print("KERNEL_OK")
</pallas_src>

<mosaic_0001>
module attributes {stable_mosaic.version = 11 : i64} {
  func.func @kernel(%arg0: i32, %arg1: i32, %arg2: memref<2x16xf32, #tpu.memory_space<vmem>>, %arg3: memref<16x512xbf16, #tpu.memory_space<vmem>>, %arg4: memref<1x512xf32, #tpu.memory_space<vmem>>, %arg5: memref<16xf32, #tpu.memory_space<smem>>, %arg6: memref<4xf32, #tpu.memory_space<smem>>, %arg7: memref<16xf32, #tpu.memory_space<smem>>, %arg8: memref<4xf32, #tpu.memory_space<smem>>, %arg9: memref<4xf32, #tpu.memory_space<smem>>, %arg10: memref<1xf32, #tpu.memory_space<smem>>, %arg11: memref<2x128xf32, #tpu.memory_space<vmem>>, %arg12: memref<2x512xf32, #tpu.memory_space<vmem>>) attributes {dimension_semantics = [#tpu.dimension_semantics<parallel>, #tpu.dimension_semantics<arbitrary>], iteration_bounds = array<i64: 1, 1>, scalar_prefetch = 0 : i64, scratch_operands = 1 : i64, tpu.core_type = #tpu.core_type<tc>, window_params = [{transform_indices = @transform_0, window_bounds = array<i64: 2, 16>}, {transform_indices = @transform_1, window_bounds = array<i64: 16, 512>}, {pipeline_mode = #tpu.pipeline_mode<synchronous>, transform_indices = @transform_2, window_bounds = array<i64: 1, 512>}, {transform_indices = @transform_3, window_bounds = array<i64: 16>}, {transform_indices = @transform_4, window_bounds = array<i64: 4>}, {transform_indices = @transform_5, window_bounds = array<i64: 16>}, {transform_indices = @transform_6, window_bounds = array<i64: 4>}, {transform_indices = @transform_7, window_bounds = array<i64: 4>}, {transform_indices = @transform_8, window_bounds = array<i64: 1>}, {transform_indices = @transform_9, window_bounds = array<i64: 2, 128>}]} {
    %c0 = arith.constant 0 : index
    %c0_0 = arith.constant 0 : index
    %0 = vector.load %arg2[%c0, %c0_0] : memref<2x16xf32, #tpu.memory_space<vmem>>, vector<2x16xf32>
    %1 = arith.truncf %0 : vector<2x16xf32> to vector<2x16xbf16>
    %c0_1 = arith.constant 0 : index
    %c0_2 = arith.constant 0 : index
    %2 = vector.load %arg3[%c0_1, %c0_2] : memref<16x512xbf16, #tpu.memory_space<vmem>>, vector<16x512xbf16>
    %cst = arith.constant dense<0.000000e+00> : vector<2x512xf32>
    %3 = tpu.matmul %1, %2, %cst {dimension_numbers = #tpu.dot_dimension_numbers<[1], [0], [0], [1], [0, 0, 1, 1], [], []>} : vector<2x16xbf16>, vector<16x512xbf16>, vector<2x512xf32> -> vector<2x512xf32>
    %c0_i32 = arith.constant 0 : i32
    %4 = arith.cmpi eq, %arg1, %c0_i32 : i32
    %5 = arith.extui %4 : i1 to i32
    %c0_i32_3 = arith.constant 0 : i32
    %6 = arith.cmpi ne, %5, %c0_i32_3 : i32
    scf.if %6 {
      %c0_8 = arith.constant 0 : index
      %c0_9 = arith.constant 0 : index
      %13 = vector.load %arg4[%c0_8, %c0_9] : memref<1x512xf32, #tpu.memory_space<vmem>>, vector<1x512xf32>
      %14 = vector.broadcast %13 : vector<1x512xf32> to vector<2x512xf32>
      %15 = arith.addf %14, %3 : vector<2x512xf32>
      %c0_10 = arith.constant 0 : index
      %c0_11 = arith.constant 0 : index
      %16 = vector.load %arg12[%c0_10, %c0_11] : memref<2x512xf32, #tpu.memory_space<vmem>>, vector<2x512xf32>
      tpu.vector_store %arg12[%c0_10, %c0_11], %15 {strides = array<i32>} : memref<2x512xf32, #tpu.memory_space<vmem>>, vector<2x512xf32>,
    } else {
    }
    %c0_i32_4 = arith.constant 0 : i32
    %7 = arith.cmpi ne, %arg1, %c0_i32_4 : i32
    %8 = arith.extui %7 : i1 to i32
    %c0_i32_5 = arith.constant 0 : i32
    %9 = arith.cmpi ne, %8, %c0_i32_5 : i32
    scf.if %9 {
      %c0_8 = arith.constant 0 : index
      %c0_9 = arith.constant 0 : index
      %13 = vector.load %arg12[%c0_8, %c0_9] : memref<2x512xf32, #tpu.memory_space<vmem>>, vector<2x512xf32>
      %14 = arith.addf %13, %3 : vector<2x512xf32>
      %c0_10 = arith.constant 0 : index
      %c0_11 = arith.constant 0 : index
      %15 = vector.load %arg12[%c0_10, %c0_11] : memref<2x512xf32, #tpu.memory_space<vmem>>, vector<2x512xf32>
      tpu.vector_store %arg12[%c0_10, %c0_11], %14 {strides = array<i32>} : memref<2x512xf32, #tpu.memory_space<vmem>>, vector<2x512xf32>,
    } else {
    }
    %c0_i32_6 = arith.constant 0 : i32
    %10 = arith.cmpi eq, %arg1, %c0_i32_6 : i32
    %11 = arith.extui %10 : i1 to i32
    %c0_i32_7 = arith.constant 0 : i32
    %12 = arith.cmpi ne, %11, %c0_i32_7 : i32
    scf.if %12 {
      %c0_8 = arith.constant 0 : index
      %13 = memref.load %arg5[%c0_8] : memref<16xf32, #tpu.memory_space<smem>>
      %14 = vector.broadcast %13 : f32 to vector<1x1xf32>
      %c1 = arith.constant 1 : index
      %15 = memref.load %arg5[%c1] : memref<16xf32, #tpu.memory_space<smem>>
      %16 = vector.broadcast %15 : f32 to vector<1x1xf32>
      %c2 = arith.constant 2 : index
      %17 = memref.load %arg5[%c2] : memref<16xf32, #tpu.memory_space<smem>>
      %18 = vector.broadcast %17 : f32 to vector<1x1xf32>
      %c3 = arith.constant 3 : index
      %19 = memref.load %arg5[%c3] : memref<16xf32, #tpu.memory_space<smem>>
      %20 = vector.broadcast %19 : f32 to vector<1x1xf32>
      %c4 = arith.constant 4 : index
      %21 = memref.load %arg5[%c4] : memref<16xf32, #tpu.memory_space<smem>>
      %22 = vector.broadcast %21 : f32 to vector<1x1xf32>
      %c5 = arith.constant 5 : index
      %23 = memref.load %arg5[%c5] : memref<16xf32, #tpu.memory_space<smem>>
      %24 = vector.broadcast %23 : f32 to vector<1x1xf32>
      %c6 = arith.constant 6 : index
      %25 = memref.load %arg5[%c6] : memref<16xf32, #tpu.memory_space<smem>>
      %26 = vector.broadcast %25 : f32 to vector<1x1xf32>
      %c7 = arith.constant 7 : index
      %27 = memref.load %arg5[%c7] : memref<16xf32, #tpu.memory_space<smem>>
      %28 = vector.broadcast %27 : f32 to vector<1x1xf32>
      %c8 = arith.constant 8 : index
      %29 = memref.load %arg5[%c8] : memref<16xf32, #tpu.memory_space<smem>>
      %30 = vector.broadcast %29 : f32 to vector<1x1xf32>
      %c9 = arith.constant 9 : index
      %31 = memref.load %arg5[%c9] : memref<16xf32, #tpu.memory_space<smem>>
      %32 = vector.broadcast %31 : f32 to vector<1x1xf32>
      %c10 = arith.constant 10 : index
      %33 = memref.load %arg5[%c10] : memref<16xf32, #tpu.memory_space<smem>>
      %34 = vector.broadcast %33 : f32 to vector<1x1xf32>
      %c11 = arith.constant 11 : index
      %35 = memref.load %arg5[%c11] : memref<16xf32, #tpu.memory_space<smem>>
      %36 = vector.broadcast %35 : f32 to vector<1x1xf32>
      %c12 = arith.constant 12 : index
      %37 = memref.load %arg5[%c12] : memref<16xf32, #tpu.memory_space<smem>>
      %38 = vector.broadcast %37 : f32 to vector<1x1xf32>
      %c13 = arith.constant 13 : index
      %39 = memref.load %arg5[%c13] : memref<16xf32, #tpu.memory_space<smem>>
      %40 = vector.broadcast %39 : f32 to vector<1x1xf32>
      %c14 = arith.constant 14 : index
      %41 = memref.load %arg5[%c14] : memref<16xf32, #tpu.memory_space<smem>>
      %42 = vector.broadcast %41 : f32 to vector<1x1xf32>
      %c15 = arith.constant 15 : index
      %43 = memref.load %arg5[%c15] : memref<16xf32, #tpu.memory_space<smem>>
      %44 = vector.broadcast %43 : f32 to vector<1x1xf32>
      %c0_9 = arith.constant 0 : index
      %45 = memref.load %arg6[%c0_9] : memref<4xf32, #tpu.memory_space<smem>>
      %46 = vector.broadcast %45 : f32 to vector<1x1xf32>
      %c1_10 = arith.constant 1 : index
      %47 = memref.load %arg6[%c1_10] : memref<4xf32, #tpu.memory_space<smem>>
      %48 = vector.broadcast %47 : f32 to vector<1x1xf32>
      %c2_11 = arith.constant 2 : index
      %49 = memref.load %arg6[%c2_11] : memref<4xf32, #tpu.memory_space<smem>>
      %50 = vector.broadcast %49 : f32 to vector<1x1xf32>
      %c3_12 = arith.constant 3 : index
      %51 = memref.load %arg6[%c3_12] : memref<4xf32, #tpu.memory_space<smem>>
      %52 = vector.broadcast %51 : f32 to vector<1x1xf32>
      %c0_13 = arith.constant 0 : index
      %53 = memref.load %arg7[%c0_13] : memref<16xf32, #tpu.memory_space<smem>>
      %54 = vector.broadcast %53 : f32 to vector<1x1xf32>
      %c1_14 = arith.constant 1 : index
      %55 = memref.load %arg7[%c1_14] : memref<16xf32, #tpu.memory_space<smem>>
      %56 = vector.broadcast %55 : f32 to vector<1x1xf32>
      %c2_15 = arith.constant 2 : index
      %57 = memref.load %arg7[%c2_15] : memref<16xf32, #tpu.memory_space<smem>>
      %58 = vector.broadcast %57 : f32 to vector<1x1xf32>
      %c3_16 = arith.constant 3 : index
      %59 = memref.load %arg7[%c3_16] : memref<16xf32, #tpu.memory_space<smem>>
      %60 = vector.broadcast %59 : f32 to vector<1x1xf32>
      %c4_17 = arith.constant 4 : index
      %61 = memref.load %arg7[%c4_17] : memref<16xf32, #tpu.memory_space<smem>>
      %62 = vector.broadcast %61 : f32 to vector<1x1xf32>
      %c5_18 = arith.constant 5 : index
      %63 = memref.load %arg7[%c5_18] : memref<16xf32, #tpu.memory_space<smem>>
      %64 = vector.broadcast %63 : f32 to vector<1x1xf32>
      %c6_19 = arith.constant 6 : index
      %65 = memref.load %arg7[%c6_19] : memref<16xf32, #tpu.memory_space<smem>>
      %66 = vector.broadcast %65 : f32 to vector<1x1xf32>
      %c7_20 = arith.constant 7 : index
      %67 = memref.load %arg7[%c7_20] : memref<16xf32, #tpu.memory_space<smem>>
      %68 = vector.broadcast %67 : f32 to vector<1x1xf32>
      %c8_21 = arith.constant 8 : index
      %69 = memref.load %arg7[%c8_21] : memref<16xf32, #tpu.memory_space<smem>>
      %70 = vector.broadcast %69 : f32 to vector<1x1xf32>
      %c9_22 = arith.constant 9 : index
      %71 = memref.load %arg7[%c9_22] : memref<16xf32, #tpu.memory_space<smem>>
      %72 = vector.broadcast %71 : f32 to vector<1x1xf32>
      %c10_23 = arith.constant 10 : index
      %73 = memref.load %arg7[%c10_23] : memref<16xf32, #tpu.memory_space<smem>>
      %74 = vector.broadcast %73 : f32 to vector<1x1xf32>
      %c11_24 = arith.constant 11 : index
      %75 = memref.load %arg7[%c11_24] : memref<16xf32, #tpu.memory_space<smem>>
      %76 = vector.broadcast %75 : f32 to vector<1x1xf32>
      %c12_25 = arith.constant 12 : index
      %77 = memref.load %arg7[%c12_25] : memref<16xf32, #tpu.memory_space<smem>>
      %78 = vector.broadcast %77 : f32 to vector<1x1xf32>
      %c13_26 = arith.constant 13 : index
      %79 = memref.load %arg7[%c13_26] : memref<16xf32, #tpu.memory_space<smem>>
      %80 = vector.broadcast %79 : f32 to vector<1x1xf32>
      %c14_27 = arith.constant 14 : index
      %81 = memref.load %arg7[%c14_27] : memref<16xf32, #tpu.memory_space<smem>>
      %82 = vector.broadcast %81 : f32 to vector<1x1xf32>
      %c15_28 = arith.constant 15 : index
      %83 = memref.load %arg7[%c15_28] : memref<16xf32, #tpu.memory_space<smem>>
      %84 = vector.broadcast %83 : f32 to vector<1x1xf32>
      %c0_29 = arith.constant 0 : index
      %85 = memref.load %arg8[%c0_29] : memref<4xf32, #tpu.memory_space<smem>>
      %86 = vector.broadcast %85 : f32 to vector<1x1xf32>
      %c1_30 = arith.constant 1 : index
      %87 = memref.load %arg8[%c1_30] : memref<4xf32, #tpu.memory_space<smem>>
      %88 = vector.broadcast %87 : f32 to vector<1x1xf32>
      %c2_31 = arith.constant 2 : index
      %89 = memref.load %arg8[%c2_31] : memref<4xf32, #tpu.memory_space<smem>>
      %90 = vector.broadcast %89 : f32 to vector<1x1xf32>
      %c3_32 = arith.constant 3 : index
      %91 = memref.load %arg8[%c3_32] : memref<4xf32, #tpu.memory_space<smem>>
      %92 = vector.broadcast %91 : f32 to vector<1x1xf32>
      %c0_33 = arith.constant 0 : index
      %93 = memref.load %arg9[%c0_33] : memref<4xf32, #tpu.memory_space<smem>>
      %94 = vector.broadcast %93 : f32 to vector<1x1xf32>
      %c1_34 = arith.constant 1 : index
      %95 = memref.load %arg9[%c1_34] : memref<4xf32, #tpu.memory_space<smem>>
      %96 = vector.broadcast %95 : f32 to vector<1x1xf32>
      %c2_35 = arith.constant 2 : index
      %97 = memref.load %arg9[%c2_35] : memref<4xf32, #tpu.memory_space<smem>>
      %98 = vector.broadcast %97 : f32 to vector<1x1xf32>
      %c3_36 = arith.constant 3 : index
      %99 = memref.load %arg9[%c3_36] : memref<4xf32, #tpu.memory_space<smem>>
      %100 = vector.broadcast %99 : f32 to vector<1x1xf32>
      %c0_37 = arith.constant 0 : index
      %101 = memref.load %arg10[%c0_37] : memref<1xf32, #tpu.memory_space<smem>>
      %102 = vector.broadcast %101 : f32 to vector<1x1xf32>
      %c0_38 = arith.constant 0 : index
      %c0_39 = arith.constant 0 : index
      %103 = vector.load %arg12[%c0_38, %c0_39] : memref<2x512xf32, #tpu.memory_space<vmem>>, vector<2x128xf32>
      %104 = arith.negf %103 : vector<2x128xf32>
      %105 = math.exp %104 : vector<2x128xf32>
      %cst_40 = arith.constant 1.000000e+00 : f32
      %106 = vector.broadcast %cst_40 : f32 to vector<2x128xf32>
      %107 = arith.addf %106, %105 : vector<2x128xf32>
      %108 = arith.divf %106, %107 : vector<2x128xf32>
      %c0_41 = arith.constant 0 : index
      %c128 = arith.constant 128 : index
      %109 = vector.load %arg12[%c0_41, %c128] : memref<2x512xf32, #tpu.memory_space<vmem>>, vector<2x128xf32>
      %110 = arith.negf %109 : vector<2x128xf32>
      %111 = math.exp %110 : vector<2x128xf32>
      %cst_42 = arith.constant 1.000000e+00 : f32
      %112 = vector.broadcast %cst_42 : f32 to vector<2x128xf32>
      %113 = arith.addf %112, %111 : vector<2x128xf32>
      %114 = arith.divf %112, %113 : vector<2x128xf32>
      %c0_43 = arith.constant 0 : index
      %c256 = arith.constant 256 : index
      %115 = vector.load %arg12[%c0_43, %c256] : memref<2x512xf32, #tpu.memory_space<vmem>>, vector<2x128xf32>
      %116 = arith.negf %115 : vector<2x128xf32>
      %117 = math.exp %116 : vector<2x128xf32>
      %cst_44 = arith.constant 1.000000e+00 : f32
      %118 = vector.broadcast %cst_44 : f32 to vector<2x128xf32>
      %119 = arith.addf %118, %117 : vector<2x128xf32>
      %120 = arith.divf %118, %119 : vector<2x128xf32>
      %c0_45 = arith.constant 0 : index
      %c384 = arith.constant 384 : index
      %121 = vector.load %arg12[%c0_45, %c384] : memref<2x512xf32, #tpu.memory_space<vmem>>, vector<2x128xf32>
      %122 = arith.negf %121 : vector<2x128xf32>
      %123 = math.exp %122 : vector<2x128xf32>
      %cst_46 = arith.constant 1.000000e+00 : f32
      %124 = vector.broadcast %cst_46 : f32 to vector<2x128xf32>
      %125 = arith.addf %124, %123 : vector<2x128xf32>
      %126 = arith.divf %124, %125 : vector<2x128xf32>
      %127 = vector.broadcast %14 : vector<1x1xf32> to vector<2x128xf32>
      %128 = arith.mulf %127, %114 : vector<2x128xf32>
      %129 = vector.broadcast %16 : vector<1x1xf32> to vector<2x128xf32>
      %130 = arith.mulf %129, %108 : vector<2x128xf32>
      %131 = arith.addf %128, %130 : vector<2x128xf32>
      %132 = vector.broadcast %18 : vector<1x1xf32> to vector<2x128xf32>
      %133 = arith.mulf %132, %126 : vector<2x128xf32>
      %134 = arith.addf %131, %133 : vector<2x128xf32>
      %135 = vector.broadcast %20 : vector<1x1xf32> to vector<2x128xf32>
      %136 = arith.mulf %135, %120 : vector<2x128xf32>
      %137 = arith.addf %134, %136 : vector<2x128xf32>
      %138 = vector.broadcast %46 : vector<1x1xf32> to vector<2x128xf32>
      %139 = arith.addf %137, %138 : vector<2x128xf32>
      %140 = arith.negf %139 : vector<2x128xf32>
      %141 = math.exp %140 : vector<2x128xf32>
      %cst_47 = arith.constant 1.000000e+00 : f32
      %142 = vector.broadcast %cst_47 : f32 to vector<2x128xf32>
      %143 = arith.addf %142, %141 : vector<2x128xf32>
      %144 = arith.divf %142, %143 : vector<2x128xf32>
      %145 = vector.broadcast %22 : vector<1x1xf32> to vector<2x128xf32>
      %146 = arith.mulf %145, %114 : vector<2x128xf32>
      %147 = vector.broadcast %24 : vector<1x1xf32> to vector<2x128xf32>
      %148 = arith.mulf %147, %108 : vector<2x128xf32>
      %149 = arith.addf %146, %148 : vector<2x128xf32>
      %150 = vector.broadcast %26 : vector<1x1xf32> to vector<2x128xf32>
      %151 = arith.mulf %150, %126 : vector<2x128xf32>
      %152 = arith.addf %149, %151 : vector<2x128xf32>
      %153 = vector.broadcast %28 : vector<1x1xf32> to vector<2x128xf32>
      %154 = arith.mulf %153, %120 : vector<2x128xf32>
      %155 = arith.addf %152, %154 : vector<2x128xf32>
      %156 = vector.broadcast %48 : vector<1x1xf32> to vector<2x128xf32>
      %157 = arith.addf %155, %156 : vector<2x128xf32>
      %158 = arith.negf %157 : vector<2x128xf32>
      %159 = math.exp %158 : vector<2x128xf32>
      %cst_48 = arith.constant 1.000000e+00 : f32
      %160 = vector.broadcast %cst_48 : f32 to vector<2x128xf32>
      %161 = arith.addf %160, %159 : vector<2x128xf32>
      %162 = arith.divf %160, %161 : vector<2x128xf32>
      %163 = vector.broadcast %30 : vector<1x1xf32> to vector<2x128xf32>
      %164 = arith.mulf %163, %114 : vector<2x128xf32>
      %165 = vector.broadcast %32 : vector<1x1xf32> to vector<2x128xf32>
      %166 = arith.mulf %165, %108 : vector<2x128xf32>
      %167 = arith.addf %164, %166 : vector<2x128xf32>
      %168 = vector.broadcast %34 : vector<1x1xf32> to vector<2x128xf32>
      %169 = arith.mulf %168, %126 : vector<2x128xf32>
      %170 = arith.addf %167, %169 : vector<2x128xf32>
      %171 = vector.broadcast %36 : vector<1x1xf32> to vector<2x128xf32>
      %172 = arith.mulf %171, %120 : vector<2x128xf32>
      %173 = arith.addf %170, %172 : vector<2x128xf32>
      %174 = vector.broadcast %50 : vector<1x1xf32> to vector<2x128xf32>
      %175 = arith.addf %173, %174 : vector<2x128xf32>
      %176 = arith.negf %175 : vector<2x128xf32>
      %177 = math.exp %176 : vector<2x128xf32>
      %cst_49 = arith.constant 1.000000e+00 : f32
      %178 = vector.broadcast %cst_49 : f32 to vector<2x128xf32>
      %179 = arith.addf %178, %177 : vector<2x128xf32>
      %180 = arith.divf %178, %179 : vector<2x128xf32>
      %181 = vector.broadcast %38 : vector<1x1xf32> to vector<2x128xf32>
      %182 = arith.mulf %181, %114 : vector<2x128xf32>
      %183 = vector.broadcast %40 : vector<1x1xf32> to vector<2x128xf32>
      %184 = arith.mulf %183, %108 : vector<2x128xf32>
      %185 = arith.addf %182, %184 : vector<2x128xf32>
      %186 = vector.broadcast %42 : vector<1x1xf32> to vector<2x128xf32>
      %187 = arith.mulf %186, %126 : vector<2x128xf32>
      %188 = arith.addf %185, %187 : vector<2x128xf32>
      %189 = vector.broadcast %44 : vector<1x1xf32> to vector<2x128xf32>
      %190 = arith.mulf %189, %120 : vector<2x128xf32>
      %191 = arith.addf %188, %190 : vector<2x128xf32>
      %192 = vector.broadcast %52 : vector<1x1xf32> to vector<2x128xf32>
      %193 = arith.addf %191, %192 : vector<2x128xf32>
      %194 = arith.negf %193 : vector<2x128xf32>
      %195 = math.exp %194 : vector<2x128xf32>
      %cst_50 = arith.constant 1.000000e+00 : f32
      %196 = vector.broadcast %cst_50 : f32 to vector<2x128xf32>
      %197 = arith.addf %196, %195 : vector<2x128xf32>
      %198 = arith.divf %196, %197 : vector<2x128xf32>
      %199 = vector.broadcast %54 : vector<1x1xf32> to vector<2x128xf32>
      %200 = arith.mulf %199, %144 : vector<2x128xf32>
      %201 = vector.broadcast %56 : vector<1x1xf32> to vector<2x128xf32>
      %202 = arith.mulf %201, %162 : vector<2x128xf32>
      %203 = arith.addf %200, %202 : vector<2x128xf32>
      %204 = vector.broadcast %58 : vector<1x1xf32> to vector<2x128xf32>
      %205 = arith.mulf %204, %180 : vector<2x128xf32>
      %206 = arith.addf %203, %205 : vector<2x128xf32>
      %207 = vector.broadcast %60 : vector<1x1xf32> to vector<2x128xf32>
      %208 = arith.mulf %207, %198 : vector<2x128xf32>
      %209 = arith.addf %206, %208 : vector<2x128xf32>
      %210 = vector.broadcast %86 : vector<1x1xf32> to vector<2x128xf32>
      %211 = arith.addf %209, %210 : vector<2x128xf32>
      %212 = arith.negf %211 : vector<2x128xf32>
      %213 = math.exp %212 : vector<2x128xf32>
      %cst_51 = arith.constant 1.000000e+00 : f32
      %214 = vector.broadcast %cst_51 : f32 to vector<2x128xf32>
      %215 = arith.addf %214, %213 : vector<2x128xf32>
      %216 = arith.divf %214, %215 : vector<2x128xf32>
      %217 = vector.broadcast %62 : vector<1x1xf32> to vector<2x128xf32>
      %218 = arith.mulf %217, %144 : vector<2x128xf32>
      %219 = vector.broadcast %64 : vector<1x1xf32> to vector<2x128xf32>
      %220 = arith.mulf %219, %162 : vector<2x128xf32>
      %221 = arith.addf %218, %220 : vector<2x128xf32>
      %222 = vector.broadcast %66 : vector<1x1xf32> to vector<2x128xf32>
      %223 = arith.mulf %222, %180 : vector<2x128xf32>
      %224 = arith.addf %221, %223 : vector<2x128xf32>
      %225 = vector.broadcast %68 : vector<1x1xf32> to vector<2x128xf32>
      %226 = arith.mulf %225, %198 : vector<2x128xf32>
      %227 = arith.addf %224, %226 : vector<2x128xf32>
      %228 = vector.broadcast %88 : vector<1x1xf32> to vector<2x128xf32>
      %229 = arith.addf %227, %228 : vector<2x128xf32>
      %230 = arith.negf %229 : vector<2x128xf32>
      %231 = math.exp %230 : vector<2x128xf32>
      %cst_52 = arith.constant 1.000000e+00 : f32
      %232 = vector.broadcast %cst_52 : f32 to vector<2x128xf32>
      %233 = arith.addf %232, %231 : vector<2x128xf32>
      %234 = arith.divf %232, %233 : vector<2x128xf32>
      %235 = vector.broadcast %70 : vector<1x1xf32> to vector<2x128xf32>
      %236 = arith.mulf %235, %144 : vector<2x128xf32>
      %237 = vector.broadcast %72 : vector<1x1xf32> to vector<2x128xf32>
      %238 = arith.mulf %237, %162 : vector<2x128xf32>
      %239 = arith.addf %236, %238 : vector<2x128xf32>
      %240 = vector.broadcast %74 : vector<1x1xf32> to vector<2x128xf32>
      %241 = arith.mulf %240, %180 : vector<2x128xf32>
      %242 = arith.addf %239, %241 : vector<2x128xf32>
      %243 = vector.broadcast %76 : vector<1x1xf32> to vector<2x128xf32>
      %244 = arith.mulf %243, %198 : vector<2x128xf32>
      %245 = arith.addf %242, %244 : vector<2x128xf32>
      %246 = vector.broadcast %90 : vector<1x1xf32> to vector<2x128xf32>
      %247 = arith.addf %245, %246 : vector<2x128xf32>
      %248 = arith.negf %247 : vector<2x128xf32>
      %249 = math.exp %248 : vector<2x128xf32>
      %cst_53 = arith.constant 1.000000e+00 : f32
      %250 = vector.broadcast %cst_53 : f32 to vector<2x128xf32>
      %251 = arith.addf %250, %249 : vector<2x128xf32>
      %252 = arith.divf %250, %251 : vector<2x128xf32>
      %253 = vector.broadcast %78 : vector<1x1xf32> to vector<2x128xf32>
      %254 = arith.mulf %253, %144 : vector<2x128xf32>
      %255 = vector.broadcast %80 : vector<1x1xf32> to vector<2x128xf32>
      %256 = arith.mulf %255, %162 : vector<2x128xf32>
      %257 = arith.addf %254, %256 : vector<2x128xf32>
      %258 = vector.broadcast %82 : vector<1x1xf32> to vector<2x128xf32>
      %259 = arith.mulf %258, %180 : vector<2x128xf32>
      %260 = arith.addf %257, %259 : vector<2x128xf32>
      %261 = vector.broadcast %84 : vector<1x1xf32> to vector<2x128xf32>
      %262 = arith.mulf %261, %198 : vector<2x128xf32>
      %263 = arith.addf %260, %262 : vector<2x128xf32>
      %264 = vector.broadcast %92 : vector<1x1xf32> to vector<2x128xf32>
      %265 = arith.addf %263, %264 : vector<2x128xf32>
      %266 = arith.negf %265 : vector<2x128xf32>
      %267 = math.exp %266 : vector<2x128xf32>
      %cst_54 = arith.constant 1.000000e+00 : f32
      %268 = vector.broadcast %cst_54 : f32 to vector<2x128xf32>
      %269 = arith.addf %268, %267 : vector<2x128xf32>
      %270 = arith.divf %268, %269 : vector<2x128xf32>
      %271 = vector.broadcast %94 : vector<1x1xf32> to vector<2x128xf32>
      %272 = arith.mulf %271, %216 : vector<2x128xf32>
      %273 = vector.broadcast %96 : vector<1x1xf32> to vector<2x128xf32>
      %274 = arith.mulf %273, %234 : vector<2x128xf32>
      %275 = arith.addf %272, %274 : vector<2x128xf32>
      %276 = vector.broadcast %98 : vector<1x1xf32> to vector<2x128xf32>
      %277 = arith.mulf %276, %252 : vector<2x128xf32>
      %278 = arith.addf %275, %277 : vector<2x128xf32>
      %279 = vector.broadcast %100 : vector<1x1xf32> to vector<2x128xf32>
      %280 = arith.mulf %279, %270 : vector<2x128xf32>
      %281 = arith.addf %278, %280 : vector<2x128xf32>
      %282 = vector.broadcast %102 : vector<1x1xf32> to vector<2x128xf32>
      %283 = arith.addf %281, %282 : vector<2x128xf32>
      %284 = math.tanh %283 : vector<2x128xf32>
      %c0_55 = arith.constant 0 : index
      %c0_56 = arith.constant 0 : index
      %285 = vector.load %arg11[%c0_55, %c0_56] : memref<2x128xf32, #tpu.memory_space<vmem>>, vector<2x128xf32>
      tpu.vector_store %arg11[%c0_55, %c0_56], %284 {strides = array<i32>} : memref<2x128xf32, #tpu.memory_space<vmem>>, vector<2x128xf32>,
    } else {
    }
    return
  }
  func.func @transform_0(%arg0: i32, %arg1: i32) -> (i32, i32) {
    %c0_i32 = arith.constant 0 : i32
    return %arg0, %arg1 : i32, i32
  }
  func.func @transform_1(%arg0: i32, %arg1: i32) -> (i32, i32) {
    %c0_i32 = arith.constant 0 : i32
    %c0_i32_0 = arith.constant 0 : i32
    return %arg1, %c0_i32 : i32, i32
  }
  func.func @transform_2(%arg0: i32, %arg1: i32) -> (i32, i32) {
    %c0_i32 = arith.constant 0 : i32
    %c0_i32_0 = arith.constant 0 : i32
    %c0_i32_1 = arith.constant 0 : i32
    return %c0_i32, %c0_i32_0 : i32, i32
  }
  func.func @transform_3(%arg0: i32, %arg1: i32) -> i32 {
    %c0_i32 = arith.constant 0 : i32
    %c0_i32_0 = arith.constant 0 : i32
    return %c0_i32 : i32
  }
  func.func @transform_4(%arg0: i32, %arg1: i32) -> i32 {
    %c0_i32 = arith.constant 0 : i32
    %c0_i32_0 = arith.constant 0 : i32
    return %c0_i32 : i32
  }
  func.func @transform_5(%arg0: i32, %arg1: i32) -> i32 {
    %c0_i32 = arith.constant 0 : i32
    %c0_i32_0 = arith.constant 0 : i32
    return %c0_i32 : i32
  }
  func.func @transform_6(%arg0: i32, %arg1: i32) -> i32 {
    %c0_i32 = arith.constant 0 : i32
    %c0_i32_0 = arith.constant 0 : i32
    return %c0_i32 : i32
  }
  func.func @transform_7(%arg0: i32, %arg1: i32) -> i32 {
    %c0_i32 = arith.constant 0 : i32
    %c0_i32_0 = arith.constant 0 : i32
    return %c0_i32 : i32
  }
  func.func @transform_8(%arg0: i32, %arg1: i32) -> i32 {
    %c0_i32 = arith.constant 0 : i32
    %c0_i32_0 = arith.constant 0 : i32
    return %c0_i32 : i32
  }
  func.func @transform_9(%arg0: i32, %arg1: i32) -> (i32, i32) {
    %c0_i32 = arith.constant 0 : i32
    %c0_i32_0 = arith.constant 0 : i32
    return %arg0, %c0_i32 : i32, i32
  }
}

</mosaic_0001>

<llo_original>
// kernel: tpu_custom_call.1
$region0: #{tpu_custom_call.1}
  #allocation0 [shape = 'u32[]', space=smem, size = 0x4, offset = 0x4, fixed_abs, tag = 'smem constant byte address 0x4 - core index']
  #allocation1 [shape = 'u32[144,128]{1,0:T(1,128)}', space=vmem, size = 0x12000, scoped, tag = 'internal scratch']
  #allocation2 [shape = 'f32[2,512]{1,0:T(2,128)}', space=vmem, size = 0x1000, scoped, tag = 'scratch operand']
  #allocation3 [shape = 'f32[1]{0:T(128)S(6)}', space=smem, size = 0x200, scoped, tag = 'scoped memory for tpu_custom_call.1']
  %s0 = inlined_call_operand.hbm [shape: f32[2,16], index: 0, kind: input, shape index: {}]
  %s1 = inlined_call_operand.hbm [shape: bf16[16,512], index: 1, kind: input, shape index: {}]
  %s2 = inlined_call_operand.hbm [shape: f32[1,512], index: 2, kind: input, shape index: {}]
  %s3 = inlined_call_operand.hbm [shape: f32[16], index: 3, kind: input, shape index: {}]
  %s4 = inlined_call_operand.hbm [shape: f32[4], index: 4, kind: input, shape index: {}]
  %s5 = inlined_call_operand.hbm [shape: f32[16], index: 5, kind: input, shape index: {}]
  %s6 = inlined_call_operand.hbm [shape: f32[4], index: 6, kind: input, shape index: {}]
  %s7 = inlined_call_operand.hbm [shape: f32[4], index: 7, kind: input, shape index: {}]
  %s8 = inlined_call_operand.<no memory space> [shape: f32[1], index: 8, kind: input, shape index: {}]
  %s9 = inlined_call_operand.hbm [shape: f32[2,128], index: 9, kind: output, shape index: {}]
  %s10 = sld [smem:[#allocation0]]
  $region90: #{tpu_custom_call.1} parent=0
    _
  %s12 = ssub.s32 1, %s10
  %s13 = scalar_select 0, %s12, %s10
  %14 = sst [smem:[#allocation3]] %s8
  $region1: #{tpu_custom_call.1} parent=0
    #allocation4 [shape = 'u8[1024]{0}', space=vmem, size = 0x400, scoped, tag = 'input window, operand 0, single buffered']
    #allocation5 [shape = 's32[1]{0}', space=sflag, size = 0x4, scoped, tag = 'scoped memory for tpu_custom_call.1']
    #allocation6 [shape = 's32[1]{0}', space=sflag, size = 0x4, scoped, tag = 'scoped memory for tpu_custom_call.1']
    #allocation7 [shape = 's32[1]{0}', space=sflag, size = 0x4, scoped, tag = 'scoped memory for tpu_custom_call.1']
    #allocation8 [shape = 'u8[16384]{0}', space=vmem, size = 0x4000, scoped, tag = 'input window, operand 1, single buffered']
    #allocation9 [shape = 's32[1]{0}', space=sflag, size = 0x4, scoped, tag = 'scoped memory for tpu_custom_call.1']
    #allocation10 [shape = 'u8[2048]{0}', space=vmem, size = 0x800, scoped, tag = 'input window, operand 2, single buffered']
    #allocation11 [shape = 'u8[512]{0}', space=smem, size = 0x200, scoped, tag = 'input window, operand 3, single buffered']
    #allocation12 [shape = 'u8[512]{0}', space=smem, size = 0x200, scoped, tag = 'input window, operand 4, single buffered']
    #allocation13 [shape = 's32[1]{0}', space=sflag, size = 0x4, scoped, tag = 'scoped memory for tpu_custom_call.1']
    #allocation14 [shape = 'u8[512]{0}', space=smem, size = 0x200, scoped, tag = 'input window, operand 5, single buffered']
    #allocation15 [shape = 'u8[512]{0}', space=smem, size = 0x200, scoped, tag = 'input window, operand 6, single buffered']
    #allocation16 [shape = 's32[1]{0}', space=sflag, size = 0x4, scoped, tag = 'scoped memory for tpu_custom_call.1']
    #allocation17 [shape = 'u8[512]{0}', space=smem, size = 0x200, scoped, tag = 'input window, operand 7, single buffered']
    #allocation18 [shape = 'u8[1024]{0}', space=vmem, size = 0x400, scoped, tag = 'output window, operand 0, single buffered']
    %15 = vsyncpa [#allocation5], 0
    %16 = vsyncpa [#allocation9], 0
    %17 = vsyncpa [#allocation7], 0
    %18 = vsyncpa [#allocation13], 0
    %19 = vsyncpa [#allocation16], 0
    %20 = vsyncpa [#allocation6], 0
    // Predicated region
    $region2: #{tpu_custom_call.1} parent=1 // pred_check
      _
    $region3: #{tpu_custom_call.1} parent=1 // pred_check_branch
      %22 = sbr.rel (0) target = $region5
    $region4: #{tpu_custom_call.1} parent=1 // pred_region
      %s24 = ssub.s32 32, 32
      %25 = vsyncadd [#allocation5], %s24
      %s27 = sshll.u32 [#allocation4], 4
      %s28 = int_to_ptr.vmem [resolvable:$true] %s27
      %30 = dma.hbm_to_vmem [thread:$0]  %s0, 32, %s28, [#allocation5]
    $region5: #{tpu_custom_call.1} parent=1 // pred_fallthru
      _
    // Predicated region
    $region6: #{tpu_custom_call.1} parent=1 // pred_check
      _
    $region7: #{tpu_custom_call.1} parent=1 // pred_check_branch
      %32 = sbr.rel (0) target = $region9
    $region8: #{tpu_custom_call.1} parent=1 // pred_region
      %s34 = ssub.s32 512, 512
      %35 = vsyncadd [#allocation9], %s34
      %s36 = sshll.u32 [#allocation8], 4
      %s37 = int_to_ptr.vmem [resolvable:$true] %s36
      %42 = dma.hbm_to_vmem [thread:$0]  %s1, 512, %s37, [#allocation9], 256, 256, 16
    $region9: #{tpu_custom_call.1} parent=1 // pred_fallthru
      _
    // Predicated region
    $region10: #{tpu_custom_call.1} parent=1 // pred_check
      _
    $region11: #{tpu_custom_call.1} parent=1 // pred_check_branch
      %44 = sbr.rel (0) target = $region13
    $region12: #{tpu_custom_call.1} parent=1 // pred_region
      %s46 = ssub.s32 64, 64
      %47 = vsyncadd [#allocation9], %s46
      %s49 = sshll.u32 [#allocation10], 4
      %s50 = int_to_ptr.vmem [resolvable:$true] %s49
      %52 = dma.hbm_to_vmem [thread:$0]  %s2, 64, %s50, [#allocation9]
    $region13: #{tpu_custom_call.1} parent=1 // pred_fallthru
      _
    // Predicated region
    $region14: #{tpu_custom_call.1} parent=1 // pred_check
      _
    $region15: #{tpu_custom_call.1} parent=1 // pred_check_branch
      %54 = sbr.rel (0) target = $region17
    $region16: #{tpu_custom_call.1} parent=1 // pred_region
      %s56 = ssub.s32 16, 16
      %57 = vsyncadd [#allocation7], %s56
      %60 = dma.hbm_to_smem %s3, 16, [#allocation11], [#allocation7]
    $region17: #{tpu_custom_call.1} parent=1 // pred_fallthru
      _
    // Predicated region
    $region18: #{tpu_custom_call.1} parent=1 // pred_check
      _
    $region19: #{tpu_custom_call.1} parent=1 // pred_check_branch
      %62 = sbr.rel (0) target = $region21
    $region20: #{tpu_custom_call.1} parent=1 // pred_region
      %s64 = ssub.s32 16, 16
      %65 = vsyncadd [#allocation13], %s64
      %68 = dma.hbm_to_smem %s4, 16, [#allocation12], [#allocation13]
    $region21: #{tpu_custom_call.1} parent=1 // pred_fallthru
      _
    // Predicated region
    $region22: #{tpu_custom_call.1} parent=1 // pred_check
      _
    $region23: #{tpu_custom_call.1} parent=1 // pred_check_branch
      %70 = sbr.rel (0) target = $region25
    $region24: #{tpu_custom_call.1} parent=1 // pred_region
      %s72 = ssub.s32 16, 16
      %73 = vsyncadd [#allocation13], %s72
      %76 = dma.hbm_to_smem %s5, 16, [#allocation14], [#allocation13]
    $region25: #{tpu_custom_call.1} parent=1 // pred_fallthru
      _
    // Predicated region
    $region26: #{tpu_custom_call.1} parent=1 // pred_check
      _
    $region27: #{tpu_custom_call.1} parent=1 // pred_check_branch
      %78 = sbr.rel (0) target = $region29
    $region28: #{tpu_custom_call.1} parent=1 // pred_region
      %s80 = ssub.s32 16, 16
      %81 = vsyncadd [#allocation16], %s80
      %84 = dma.hbm_to_smem %s6, 16, [#allocation15], [#allocation16]
    $region29: #{tpu_custom_call.1} parent=1 // pred_fallthru
      _
    // Predicated region
    $region30: #{tpu_custom_call.1} parent=1 // pred_check
      _
    $region31: #{tpu_custom_call.1} parent=1 // pred_check_branch
      %86 = sbr.rel (0) target = $region33
    $region32: #{tpu_custom_call.1} parent=1 // pred_region
      %s88 = ssub.s32 16, 16
      %89 = vsyncadd [#allocation16], %s88
      %92 = dma.hbm_to_smem %s7, 16, [#allocation17], [#allocation16]
    $region33: #{tpu_custom_call.1} parent=1 // pred_fallthru
      _
    // Predicated region
    $region34: #{tpu_custom_call.1} parent=1 // pred_check
      _
    $region35: #{tpu_custom_call.1} parent=1 // pred_check_branch
      %94 = sbr.rel (0) target = $region37
    $region36: #{tpu_custom_call.1} parent=1 // pred_region
      _
    $region37: #{tpu_custom_call.1} parent=1 // pred_fallthru
      _
    // Predicated region
    $region38: #{tpu_custom_call.1} parent=1 // pred_check
      _
    $region39: #{tpu_custom_call.1} parent=1 // pred_check_branch
      %96 = sbr.rel (0) target = $region41
    $region40: #{tpu_custom_call.1} parent=1 // pred_region
      %97 = dma.done [#allocation5], 32
    $region41: #{tpu_custom_call.1} parent=1 // pred_fallthru
      _
    // Predicated region
    $region42: #{tpu_custom_call.1} parent=1 // pred_check
      _
    $region43: #{tpu_custom_call.1} parent=1 // pred_check_branch
      %99 = sbr.rel (0) target = $region45
    $region44: #{tpu_custom_call.1} parent=1 // pred_region
      %100 = dma.done [#allocation9], 512
    $region45: #{tpu_custom_call.1} parent=1 // pred_fallthru
      _
    // Predicated region
    $region46: #{tpu_custom_call.1} parent=1 // pred_check
      _
    $region47: #{tpu_custom_call.1} parent=1 // pred_check_branch
      %102 = sbr.rel (0) target = $region49
    $region48: #{tpu_custom_call.1} parent=1 // pred_region
      %103 = dma.done [#allocation9], 64
    $region49: #{tpu_custom_call.1} parent=1 // pred_fallthru
      _
    // Predicated region
    $region50: #{tpu_custom_call.1} parent=1 // pred_check
      _
    $region51: #{tpu_custom_call.1} parent=1 // pred_check_branch
      %105 = sbr.rel (0) target = $region53
    $region52: #{tpu_custom_call.1} parent=1 // pred_region
      %106 = dma.done [#allocation7], 16
    $region53: #{tpu_custom_call.1} parent=1 // pred_fallthru
      _
    // Predicated region
    $region54: #{tpu_custom_call.1} parent=1 // pred_check
      _
    $region55: #{tpu_custom_call.1} parent=1 // pred_check_branch
      %108 = sbr.rel (0) target = $region57
    $region56: #{tpu_custom_call.1} parent=1 // pred_region
      %109 = dma.done [#allocation13], 16
    $region57: #{tpu_custom_call.1} parent=1 // pred_fallthru
      _
    // Predicated region
    $region58: #{tpu_custom_call.1} parent=1 // pred_check
      _
    $region59: #{tpu_custom_call.1} parent=1 // pred_check_branch
      %111 = sbr.rel (0) target = $region61
    $region60: #{tpu_custom_call.1} parent=1 // pred_region
      %112 = dma.done [#allocation13], 16
    $region61: #{tpu_custom_call.1} parent=1 // pred_fallthru
      _
    // Predicated region
    $region62: #{tpu_custom_call.1} parent=1 // pred_check
      _
    $region63: #{tpu_custom_call.1} parent=1 // pred_check_branch
      %114 = sbr.rel (0) target = $region65
    $region64: #{tpu_custom_call.1} parent=1 // pred_region
      %115 = dma.done [#allocation16], 16
    $region65: #{tpu_custom_call.1} parent=1 // pred_fallthru
      _
    // Predicated region
    $region66: #{tpu_custom_call.1} parent=1 // pred_check
      _
    $region67: #{tpu_custom_call.1} parent=1 // pred_check_branch
      %117 = sbr.rel (0) target = $region69
    $region68: #{tpu_custom_call.1} parent=1 // pred_region
      %118 = dma.done [#allocation16], 16
    $region69: #{tpu_custom_call.1} parent=1 // pred_fallthru
      _
    %119 = sfence
    %v121 = vld [vmem:[#allocation4] sm:$0x3]
    %v122 = vpack.c.bf16 %v121, %v121
    %v123 = vld [vmem:[#allocation8] sm:$0xff]
    %v124 = vld [vmem:[#allocation8 + $0x8] sm:$0xff]
    %v125 = vld [vmem:[#allocation8 + $0x10] sm:$0xff]
    %v126 = vld [vmem:[#allocation8 + $0x18] sm:$0xff]
    %v131 = vunpack.c.l.b16 %v123
    %v132 = vunpack.c.h.b16 %v123
    %v133 = vunpack.c.l.b16 %v124
    %v134 = vunpack.c.h.b16 %v124
    %v135 = vunpack.c.l.b16 %v125
    %v136 = vunpack.c.h.b16 %v125
    %v137 = vunpack.c.l.b16 %v126
    %v138 = vunpack.c.h.b16 %v126
    %v139 = vpack.c.b16 %v135, %v131
    %v140 = vpack.c.b16 %v136, %v132
    %v141 = vpack.c.b16 %v137, %v133
    %v142 = vpack.c.b16 %v138, %v134
    %vm147 = vcmask 130048
    %v149 = vsel %vm147, %v122, 0
    %151 = vmatprep.subr.bf16.mxu0 %v140
    %152 = vmatpush1.bf16.msra.mxu0 %v139
    %153 = vmatprep.subr.bf16.mxu0 0
    %154 = vmatpush1.bf16.msra.mxu0 0
    %155 = vmatprep.subr.bf16.mxu0 0
    %156 = vmatpush1.bf16.msra.mxu0 0
    %157 = vmatprep.subr.bf16.mxu0 0
    %158 = vmatpush1.bf16.msra.mxu0 0
    %159 = vmatprep.subr.bf16.mxu0 0
    %160 = vmatpush1.bf16.msra.mxu0 0
    %161 = vmatprep.subr.bf16.mxu0 0
    %162 = vmatpush1.bf16.msra.mxu0 0
    %163 = vmatprep.subr.bf16.mxu0 0
    %164 = vmatpush1.bf16.msra.mxu0 0
    %165 = vmatprep.subr.bf16.mxu0 0
    %166 = vmatpush1.bf16.msra.mxu0 0
    %167 = vmatprep.subr.bf16.mxu0 0
    %168 = vmatpush1.bf16.msra.mxu0 0
    %169 = vmatprep.subr.bf16.mxu0 0
    %170 = vmatpush1.bf16.msra.mxu0 0
    %171 = vmatprep.subr.bf16.mxu0 0
    %172 = vmatpush1.bf16.msra.mxu0 0
    %173 = vmatprep.subr.bf16.mxu0 0
    %174 = vmatpush1.bf16.msra.mxu0 0
    %175 = vmatprep.subr.bf16.mxu0 0
    %176 = vmatpush1.bf16.msra.mxu0 0
    %177 = vmatprep.subr.bf16.mxu0 0
    %178 = vmatpush1.bf16.msra.mxu0 0
    %179 = vmatprep.subr.bf16.mxu0 0
    %180 = vmatpush1.bf16.msra.mxu0 0
    %181 = vmatprep.subr.bf16.mxu0 0
    %182 = vmatpush1.bf16.msra.mxu0 0
    %183 = vmatprep.mubr.bf16.mxu0 0
    %184 = vmatmul.mubr.bf16.gmra.mrb[0].mxu0 %v149
    %v185 = vpop.f32.mrb[0].mxu0
    %v186 = vadd.f32 0.0, %v185
    %v187 = vpop.f32.mrb[0].mxu0
    %v188 = vadd.f32 0.0, %v187
    %v189 = vpop.f32.mrb[0].mxu0
    %v190 = vpop.f32.mrb[0].mxu0
    %191 = vdwg.mxu0
    %192 = vmatprep.subr.bf16.mxu0 %v142
    %193 = vmatpush1.bf16.msra.mxu0 %v141
    %194 = vmatprep.subr.bf16.mxu0 0
    %195 = vmatpush1.bf16.msra.mxu0 0
    %196 = vmatprep.subr.bf16.mxu0 0
    %197 = vmatpush1.bf16.msra.mxu0 0
    %198 = vmatprep.subr.bf16.mxu0 0
    %199 = vmatpush1.bf16.msra.mxu0 0
    %200 = vmatprep.subr.bf16.mxu0 0
    %201 = vmatpush1.bf16.msra.mxu0 0
    %202 = vmatprep.subr.bf16.mxu0 0
    %203 = vmatpush1.bf16.msra.mxu0 0
    %204 = vmatprep.subr.bf16.mxu0 0
    %205 = vmatpush1.bf16.msra.mxu0 0
    %206 = vmatprep.subr.bf16.mxu0 0
    %207 = vmatpush1.bf16.msra.mxu0 0
    %208 = vmatprep.subr.bf16.mxu0 0
    %209 = vmatpush1.bf16.msra.mxu0 0
    %210 = vmatprep.subr.bf16.mxu0 0
    %211 = vmatpush1.bf16.msra.mxu0 0
    %212 = vmatprep.subr.bf16.mxu0 0
    %213 = vmatpush1.bf16.msra.mxu0 0
    %214 = vmatprep.subr.bf16.mxu0 0
    %215 = vmatpush1.bf16.msra.mxu0 0
    %216 = vmatprep.subr.bf16.mxu0 0
    %217 = vmatpush1.bf16.msra.mxu0 0
    %218 = vmatprep.subr.bf16.mxu0 0
    %219 = vmatpush1.bf16.msra.mxu0 0
    %220 = vmatprep.subr.bf16.mxu0 0
    %221 = vmatpush1.bf16.msra.mxu0 0
    %222 = vmatprep.subr.bf16.mxu0 0
    %223 = vmatpush1.bf16.msra.mxu0 0
    %224 = vmatprep.mubr.bf16.mxu0 0
    %225 = vmatmul.mubr.bf16.gmra.mrb[0].mxu0 %v149
    %v226 = vpop.f32.mrb[0].mxu0
    %v227 = vadd.f32 0.0, %v226
    %v228 = vpop.f32.mrb[0].mxu0
    %v229 = vadd.f32 0.0, %v228
    %v230 = vpop.f32.mrb[0].mxu0
    %v231 = vpop.f32.mrb[0].mxu0
    %232 = vdwg.mxu0
    %p233 = scmp.eq.s32.totalorder 0, 0
    // Predicated region
    $region70: #{tpu_custom_call.1} parent=1 // pred_check
      %p234 = pneg %p233
    $region71: #{tpu_custom_call.1} parent=1 // pred_check_branch
      %236 = sbr.rel (%p234) target = $region73
    $region72: #{tpu_custom_call.1} parent=1 // pred_region
      %v237 = vld [vmem:[#allocation10] sm:$0xf]
      %v239 = vlaneseq
      %v240 = vshrl.u32 %v239, 7
      %v241 = vsub.s32 0, %v240
      %v242 = vrot.slane %v237, %v241
      %v243 = vlaneseq
      %v244 = vshrl.u32 %v243, 7
      %v245 = vsub.s32 1, %v244
      %v246 = vrot.slane %v237, %v245
      %v247 = vlaneseq
      %v248 = vshrl.u32 %v247, 7
      %v249 = vsub.s32 2, %v248
      %v250 = vrot.slane %v237, %v249
      %v251 = vlaneseq
      %v252 = vshrl.u32 %v251, 7
      %v253 = vsub.s32 3, %v252
      %v254 = vrot.slane %v237, %v253
      %v259 = vadd.f32 %v242, %v186
      %v260 = vadd.f32 %v246, %v188
      %v261 = vadd.f32 %v250, %v227
      %v262 = vadd.f32 %v254, %v229
      %v267 = vcombine.low %v259, %v260
      %v268 = vcombine.low %v261, %v262
      %v270 = vunpack.c.l.s4 1983009808
      %v271 = vunpack.c.0.s8 %v270
      %v272 = vlaneseq
      %v273 = vshrl.u32 %v272, 7
      %v274 = vsub.s32 %v271, %v273
      %v275 = vrot.slane %v267, %v274
      %v277 = vunpack.c.l.s4 1983009808
      %v278 = vunpack.c.0.s8 %v277
      %v279 = vlaneseq
      %v280 = vshrl.u32 %v279, 7
      %v281 = vsub.s32 %v278, %v280
      %v282 = vrot.slane %v268, %v281
      %v283 = vcombine.low %v275, %v282
      %285 = vst [vmem:[#allocation2] sm:$0xff] %v283
    $region73: #{tpu_custom_call.1} parent=1 // pred_fallthru
      _
    %p286 = scmp.ne.s32.totalorder 0, 0
    // Predicated region
    $region74: #{tpu_custom_call.1} parent=1 // pred_check
      %p287 = pneg %p286
    $region75: #{tpu_custom_call.1} parent=1 // pred_check_branch
      %289 = sbr.rel (%p287) target = $region77
    $region76: #{tpu_custom_call.1} parent=1 // pred_region
      %v290 = vld [vmem:[#allocation2] sm:$0xff]
      %v295 = vcombine.low %v186, %v188
      %v296 = vcombine.low %v227, %v229
      %v298 = vunpack.c.l.s4 1983009808
      %v299 = vunpack.c.0.s8 %v298
      %v300 = vlaneseq
      %v301 = vshrl.u32 %v300, 7
      %v302 = vsub.s32 %v299, %v301
      %v303 = vrot.slane %v295, %v302
      %v305 = vunpack.c.l.s4 1983009808
      %v306 = vunpack.c.0.s8 %v305
      %v307 = vlaneseq
      %v308 = vshrl.u32 %v307, 7
      %v309 = vsub.s32 %v306, %v308
      %v310 = vrot.slane %v296, %v309
      %v311 = vcombine.low %v303, %v310
      %v313 = vadd.f32 %v290, %v311
      %314 = vst [vmem:[#allocation2] sm:$0xff] %v313
    $region77: #{tpu_custom_call.1} parent=1 // pred_fallthru
      _
    // Predicated region
    $region78: #{tpu_custom_call.1} parent=1 // pred_check
      %p315 = pneg %p233
    $region79: #{tpu_custom_call.1} parent=1 // pred_check_branch
      %317 = sbr.rel (%p315) target = $region81
    $region80: #{tpu_custom_call.1} parent=1 // pred_region
      %s318 = sld [smem:[#allocation11]]
      %s319 = sld [smem:[#allocation11 + $0x1]]
      %s320 = sld [smem:[#allocation11 + $0x2]]
      %s321 = sld [smem:[#allocation11 + $0x3]]
      %s322 = sld [smem:[#allocation11 + $0x4]]
      %s323 = sld [smem:[#allocation11 + $0x5]]
      %s324 = sld [smem:[#allocation11 + $0x6]]
      %s325 = sld [smem:[#allocation11 + $0x7]]
      %s326 = sld [smem:[#allocation11 + $0x8]]
      %s327 = sld [smem:[#allocation11 + $0x9]]
      %s328 = sld [smem:[#allocation11 + $0xa]]
      %s329 = sld [smem:[#allocation11 + $0xb]]
      %s330 = sld [smem:[#allocation11 + $0xc]]
      %s331 = sld [smem:[#allocation11 + $0xd]]
      %s332 = sld [smem:[#allocation11 + $0xe]]
      %s333 = sld [smem:[#allocation11 + $0xf]]
      %s334 = sld [smem:[#allocation12]]
      %s335 = sld [smem:[#allocation12 + $0x1]]
      %s336 = sld [smem:[#allocation12 + $0x2]]
      %s337 = sld [smem:[#allocation12 + $0x3]]
      %s338 = sld [smem:[#allocation14]]
      %s339 = sld [smem:[#allocation14 + $0x1]]
      %s340 = sld [smem:[#allocation14 + $0x2]]
      %s341 = sld [smem:[#allocation14 + $0x3]]
      %s342 = sld [smem:[#allocation14 + $0x4]]
      %s343 = sld [smem:[#allocation14 + $0x5]]
      %s344 = sld [smem:[#allocation14 + $0x6]]
      %s345 = sld [smem:[#allocation14 + $0x7]]
      %s346 = sld [smem:[#allocation14 + $0x8]]
      %s347 = sld [smem:[#allocation14 + $0x9]]
      %s348 = sld [smem:[#allocation14 + $0xa]]
      %s349 = sld [smem:[#allocation14 + $0xb]]
      %s350 = sld [smem:[#allocation14 + $0xc]]
      %s351 = sld [smem:[#allocation14 + $0xd]]
      %s352 = sld [smem:[#allocation14 + $0xe]]
      %s353 = sld [smem:[#allocation14 + $0xf]]
      %s354 = sld [smem:[#allocation15]]
      %s355 = sld [smem:[#allocation15 + $0x1]]
      %s356 = sld [smem:[#allocation15 + $0x2]]
      %s357 = sld [smem:[#allocation15 + $0x3]]
      %s358 = sld [smem:[#allocation17]]
      %s359 = sld [smem:[#allocation17 + $0x1]]
      %s360 = sld [smem:[#allocation17 + $0x2]]
      %s361 = sld [smem:[#allocation17 + $0x3]]
      %s362 = sld [smem:[#allocation3]]
      %v363 = vld [vmem:[#allocation2] sm:$0x3]
      %v364 = vxor.u32 %v363, 2147483648
      %v365 = vmul.f32 %v364, 1.442695
      %v366 = vpow.pop %v365
      %v367 = vadd.f32 %v366, 1.0
      %v368 = vrcp.pop %v367
      %v369 = vmul.f32 1.0, %v368
      %v370 = vld [vmem:[#allocation2 + $0x2] sm:$0x3]
      %v371 = vxor.u32 %v370, 2147483648
      %v372 = vmul.f32 %v371, 1.442695
      %v373 = vpow.pop %v372
      %v374 = vadd.f32 %v373, 1.0
      %v375 = vrcp.pop %v374
      %v376 = vmul.f32 1.0, %v375
      %v377 = vld [vmem:[#allocation2 + $0x4] sm:$0x3]
      %v378 = vxor.u32 %v377, 2147483648
      %v379 = vmul.f32 %v378, 1.442695
      %v380 = vpow.pop %v379
      %v381 = vadd.f32 %v380, 1.0
      %v382 = vrcp.pop %v381
      %v383 = vmul.f32 1.0, %v382
      %v384 = vld [vmem:[#allocation2 + $0x6] sm:$0x3]
      %v385 = vxor.u32 %v384, 2147483648
      %v386 = vmul.f32 %v385, 1.442695
      %v387 = vpow.pop %v386
      %v388 = vadd.f32 %v387, 1.0
      %v389 = vrcp.pop %v388
      %v390 = vmul.f32 1.0, %v389
      %v391 = vstv %s318
      %v392 = vmul.f32 %v391, %v376
      %v393 = vstv %s319
      %v394 = vmul.f32 %v393, %v369
      %v395 = vadd.f32 %v392, %v394
      %v396 = vstv %s320
      %v397 = vmul.f32 %v396, %v390
      %v398 = vadd.f32 %v395, %v397
      %v399 = vstv %s321
      %v400 = vmul.f32 %v399, %v383
      %v401 = vadd.f32 %v398, %v400
      %v402 = vstv %s334
      %v403 = vadd.f32 %v401, %v402
      %v404 = vxor.u32 %v403, 2147483648
      %v405 = vmul.f32 %v404, 1.442695
      %v406 = vpow.pop %v405
      %v407 = vadd.f32 %v406, 1.0
      %v408 = vrcp.pop %v407
      %v409 = vmul.f32 1.0, %v408
      %v410 = vstv %s322
      %v411 = vmul.f32 %v410, %v376
      %v412 = vstv %s323
      %v413 = vmul.f32 %v412, %v369
      %v414 = vadd.f32 %v411, %v413
      %v415 = vstv %s324
      %v416 = vmul.f32 %v415, %v390
      %v417 = vadd.f32 %v414, %v416
      %v418 = vstv %s325
      %v419 = vmul.f32 %v418, %v383
      %v420 = vadd.f32 %v417, %v419
      %v421 = vstv %s335
      %v422 = vadd.f32 %v420, %v421
      %v423 = vxor.u32 %v422, 2147483648
      %v424 = vmul.f32 %v423, 1.442695
      %v425 = vpow.pop %v424
      %v426 = vadd.f32 %v425, 1.0
      %v427 = vrcp.pop %v426
      %v428 = vmul.f32 1.0, %v427
      %v429 = vstv %s326
      %v430 = vmul.f32 %v429, %v376
      %v431 = vstv %s327
      %v432 = vmul.f32 %v431, %v369
      %v433 = vadd.f32 %v430, %v432
      %v434 = vstv %s328
      %v435 = vmul.f32 %v434, %v390
      %v436 = vadd.f32 %v433, %v435
      %v437 = vstv %s329
      %v438 = vmul.f32 %v437, %v383
      %v439 = vadd.f32 %v436, %v438
      %v440 = vstv %s336
      %v441 = vadd.f32 %v439, %v440
      %v442 = vxor.u32 %v441, 2147483648
      %v443 = vmul.f32 %v442, 1.442695
      %v444 = vpow.pop %v443
      %v445 = vadd.f32 %v444, 1.0
      %v446 = vrcp.pop %v445
      %v447 = vmul.f32 1.0, %v446
      %v448 = vstv %s330
      %v449 = vmul.f32 %v448, %v376
      %v450 = vstv %s331
      %v451 = vmul.f32 %v450, %v369
      %v452 = vadd.f32 %v449, %v451
      %v453 = vstv %s332
      %v454 = vmul.f32 %v453, %v390
      %v455 = vadd.f32 %v452, %v454
      %v456 = vstv %s333
      %v457 = vmul.f32 %v456, %v383
      %v458 = vadd.f32 %v455, %v457
      %v459 = vstv %s337
      %v460 = vadd.f32 %v458, %v459
      %v461 = vxor.u32 %v460, 2147483648
      %v462 = vmul.f32 %v461, 1.442695
      %v463 = vpow.pop %v462
      %v464 = vadd.f32 %v463, 1.0
      %v465 = vrcp.pop %v464
      %v466 = vmul.f32 1.0, %v465
      %v467 = vstv %s338
      %v468 = vmul.f32 %v467, %v409
      %v469 = vstv %s339
      %v470 = vmul.f32 %v469, %v428
      %v471 = vadd.f32 %v468, %v470
      %v472 = vstv %s340
      %v473 = vmul.f32 %v472, %v447
      %v474 = vadd.f32 %v471, %v473
      %v475 = vstv %s341
      %v476 = vmul.f32 %v475, %v466
      %v477 = vadd.f32 %v474, %v476
      %v478 = vstv %s354
      %v479 = vadd.f32 %v477, %v478
      %v480 = vxor.u32 %v479, 2147483648
      %v481 = vmul.f32 %v480, 1.442695
      %v482 = vpow.pop %v481
      %v483 = vadd.f32 %v482, 1.0
      %v484 = vrcp.pop %v483
      %v485 = vmul.f32 1.0, %v484
      %v486 = vstv %s342
      %v487 = vmul.f32 %v486, %v409
      %v488 = vstv %s343
      %v489 = vmul.f32 %v488, %v428
      %v490 = vadd.f32 %v487, %v489
      %v491 = vstv %s344
      %v492 = vmul.f32 %v491, %v447
      %v493 = vadd.f32 %v490, %v492
      %v494 = vstv %s345
      %v495 = vmul.f32 %v494, %v466
      %v496 = vadd.f32 %v493, %v495
      %v497 = vstv %s355
      %v498 = vadd.f32 %v496, %v497
      %v499 = vxor.u32 %v498, 2147483648
      %v500 = vmul.f32 %v499, 1.442695
      %v501 = vpow.pop %v500
      %v502 = vadd.f32 %v501, 1.0
      %v503 = vrcp.pop %v502
      %v504 = vmul.f32 1.0, %v503
      %v505 = vstv %s346
      %v506 = vmul.f32 %v505, %v409
      %v507 = vstv %s347
      %v508 = vmul.f32 %v507, %v428
      %v509 = vadd.f32 %v506, %v508
      %v510 = vstv %s348
      %v511 = vmul.f32 %v510, %v447
      %v512 = vadd.f32 %v509, %v511
      %v513 = vstv %s349
      %v514 = vmul.f32 %v513, %v466
      %v515 = vadd.f32 %v512, %v514
      %v516 = vstv %s356
      %v517 = vadd.f32 %v515, %v516
      %v518 = vxor.u32 %v517, 2147483648
      %v519 = vmul.f32 %v518, 1.442695
      %v520 = vpow.pop %v519
      %v521 = vadd.f32 %v520, 1.0
      %v522 = vrcp.pop %v521
      %v523 = vmul.f32 1.0, %v522
      %v524 = vstv %s350
      %v525 = vmul.f32 %v524, %v409
      %v526 = vstv %s351
      %v527 = vmul.f32 %v526, %v428
      %v528 = vadd.f32 %v525, %v527
      %v529 = vstv %s352
      %v530 = vmul.f32 %v529, %v447
      %v531 = vadd.f32 %v528, %v530
      %v532 = vstv %s353
      %v533 = vmul.f32 %v532, %v466
      %v534 = vadd.f32 %v531, %v533
      %v535 = vstv %s357
      %v536 = vadd.f32 %v534, %v535
      %v537 = vxor.u32 %v536, 2147483648
      %v538 = vmul.f32 %v537, 1.442695
      %v539 = vpow.pop %v538
      %v540 = vadd.f32 %v539, 1.0
      %v541 = vrcp.pop %v540
      %v542 = vmul.f32 1.0, %v541
      %v543 = vstv %s358
      %v544 = vmul.f32 %v543, %v485
      %v545 = vstv %s359
      %v546 = vmul.f32 %v545, %v504
      %v547 = vadd.f32 %v544, %v546
      %v548 = vstv %s360
      %v549 = vmul.f32 %v548, %v523
      %v550 = vadd.f32 %v547, %v549
      %v551 = vstv %s361
      %v552 = vmul.f32 %v551, %v542
      %v553 = vadd.f32 %v550, %v552
      %v554 = vstv %s362
      %v555 = vadd.f32 %v553, %v554
      %v556 = vtanh.pop %v555
      %557 = vst [vmem:[#allocation18] sm:$0x3] %v556
    $region81: #{tpu_custom_call.1} parent=1 // pred_fallthru
      _
    // Predicated region
    $region82: #{tpu_custom_call.1} parent=1 // pred_check
      _
    $region83: #{tpu_custom_call.1} parent=1 // pred_check_branch
      %559 = sbr.rel (0) target = $region85
    $region84: #{tpu_custom_call.1} parent=1 // pred_region
      %s561 = ssub.s32 32, 32
      %562 = vsyncadd [#allocation6], %s561
      %s564 = sshll.u32 [#allocation18], 4
      %s565 = int_to_ptr.vmem [resolvable:$true] %s564
      %567 = dma.vmem_to_hbm [thread:$0]  %s565, 32, %s9, [#allocation6]
    $region85: #{tpu_custom_call.1} parent=1 // pred_fallthru
      _
    // Predicated region
    $region86: #{tpu_custom_call.1} parent=1 // pred_check
      _
    $region87: #{tpu_custom_call.1} parent=1 // pred_check_branch
      %569 = sbr.rel (0) target = $region89
    $region88: #{tpu_custom_call.1} parent=1 // pred_region
      %570 = dma.done [#allocation6], 32
    $region89: #{tpu_custom_call.1} parent=1 // pred_fallthru
      _
    %571 = vsyncpa [#allocation5], 1
    %572 = vsyncpa [#allocation9], 1
    %573 = vsyncpa [#allocation6], 1
    %574 = vsyncpa [#allocation7], 1
    %575 = vsyncpa [#allocation13], 1
    %576 = vsyncpa [#allocation16], 1

</llo_original>
